<compile_context>
chip_gen: v5e
topology: v5e:2x2
jax: 0.10.0
libtpu: 0.0.40
codegen_flags: <defaults>
</compile_context>

<pallas_src>
import functools
import math

import jax
import jax.numpy as jnp
from jax import lax
from jax.experimental import pallas as pl
from jax.experimental.pallas import tpu as pltpu

EPS = 1e-6            # custom LayerNorm eps in the reference code
NEG_INF = -1.0e9      # additive mask value used by User_Encoder.forward
COMPUTE_DTYPE = jnp.bfloat16   # MXU operand dtype (accumulation is always f32)

# packed per-layer vector rows (all length D):
#   0 ln1_g, 1 ln1_b, 2 bq, 3 bk, 4 bv, 5 bo, 6 ln2_g, 7 ln2_b, 8 b2


# --------------------------------------------------------------------------
# shared math (used by the kernel AND the pure-jnp reference, so the two are
# numerically structure-matched; only the reciprocal impl / pv buffer differ)
# --------------------------------------------------------------------------
def _mm(a, w):
    """a @ w on the MXU: bf16 operands, f32 accumulation."""
    return jnp.dot(a.astype(COMPUTE_DTYPE), w.astype(COMPUTE_DTYPE),
                   preferred_element_type=jnp.float32)


def _mm_nt(a, b):
    """a @ b.T without materializing a transpose (contract over last dims)."""
    return lax.dot_general(a.astype(COMPUTE_DTYPE), b.astype(COMPUTE_DTYPE),
                           (((1,), (1,)), ((), ())),
                           preferred_element_type=jnp.float32)


def _layer_norm(x, g, b, recip):
    # matches the reference LayerNorm: g * (x - mean) / (std_unbiased + eps) + b
    mean = jnp.mean(x, axis=-1, keepdims=True)
    diff = x - mean
    var = jnp.sum(diff * diff, axis=-1, keepdims=True) * (1.0 / (x.shape[-1] - 1))
    std = jnp.sqrt(var)
    return g * diff * recip(std + EPS) + b


def _gelu_tanh(x):
    # matches the reference GELU module (tanh approximation)
    c = math.sqrt(2.0 / math.pi)
    return 0.5 * x * (1.0 + jnp.tanh(c * (x + 0.044715 * x * x * x)))


def _block_math(x, att_mask, vecs, wqkv, wo, w1, b1, w2, *,
                n_heads, recip, pv_buf=None):
    """One pre-LN transformer block on a single (S, D) activation slab (f32 in/out).

    pv_buf: optional (S, D) bf16 VMEM scratch ref.  If given, each head's P@V slab is
    stored into its lane slice (bounds per-head live ranges) and the output projection
    is a single K=D matmul; if None (pure-jnp reference) the slabs are concatenated.
    """
    S, D = x.shape
    dh = D // n_heads
    ln1_g, ln1_b = vecs[0:1], vecs[1:2]
    bq, bk, bv, bo = vecs[2:3], vecs[3:4], vecs[4:5], vecs[5:6]
    ln2_g, ln2_b, b2 = vecs[6:7], vecs[7:8], vecs[8:9]

    # --- multi-head self-attention (pre-norm, residual) ----------------------
    h = _layer_norm(x, ln1_g, ln1_b, recip)
    qkv = _mm(h, wqkv)                                     # (S, 3D), one fused matmul
    q = qkv[:, 0 * D:1 * D] + bq
    k = qkv[:, 1 * D:2 * D] + bk
    v = qkv[:, 2 * D:3 * D] + bv

    scale = 1.0 / math.sqrt(dh)
    pv_heads = []
    for hh in range(n_heads):                              # static unroll over heads
        sl = slice(hh * dh, (hh + 1) * dh)
        s = _mm_nt(q[:, sl], k[:, sl]) * scale + att_mask  # (S, S)
        s = s - jnp.max(s, axis=-1, keepdims=True)
        p = jnp.exp(s)
        p = p * recip(jnp.sum(p, axis=-1, keepdims=True))
        pv = _mm(p, v[:, sl])                              # (S, dh)
        if pv_buf is not None:
            pv_buf[:, sl] = pv.astype(pv_buf.dtype)        # store -> bounded live range
        else:
            pv_heads.append(pv.astype(COMPUTE_DTYPE))
    pv_all = pv_buf[...] if pv_buf is not None else jnp.concatenate(pv_heads, axis=1)
    attn = _mm(pv_all, wo)                                 # single K=D output projection
    x = x + attn + bo                                      # dropout == identity at eval

    # --- position-wise feed-forward (pre-norm, residual) ---------------------
    h = _layer_norm(x, ln2_g, ln2_b, recip)
    f = _gelu_tanh(_mm(h, w1) + b1)
    return x + _mm(f, w2) + b2


# --------------------------------------------------------------------------
# Pallas kernel: grid = (batch, layer); activation carried in VMEM scratch
# --------------------------------------------------------------------------
def _encoder_kernel(mask_ref, x_ref, pos_ref,
                    vecs_ref, wqkv_ref, wo_ref, w1_ref, b1_ref, w2_ref,
                    o_ref, act_ref, pv_ref, *, n_heads):
    l = pl.program_id(1)
    S, D = act_ref.shape

    @pl.when(l == 0)
    def _():   # layer 0: load the batch slab and fuse the positional-embedding add
        act_ref[...] = x_ref[0].astype(jnp.float32) + pos_ref[...].astype(jnp.float32)

    # In-kernel additive mask: exactly 0 (keep) / -1e9 (drop), matching
    # torch.where(tril(pad_mask), 0, -1e9).  Pure VPU iota+compare, no (S,S) DMA.
    row = lax.broadcasted_iota(jnp.int32, (S, S), 0)
    col = lax.broadcasted_iota(jnp.int32, (S, S), 1)
    keep = (row >= col) & (mask_ref[0] != 0.0)             # (S,S) & (1,S) -> (S,S)
    att_mask = jnp.where(keep, 0.0, NEG_INF).astype(jnp.float32)

    y = _block_math(act_ref[...], att_mask,
                    vecs_ref[0], wqkv_ref[0], wo_ref[0],
                    w1_ref[0], b1_ref[0], w2_ref[0],
                    n_heads=n_heads,
                    recip=lambda t: pl.reciprocal(t, approx=True),
                    pv_buf=pv_ref)
    act_ref[...] = y                                       # carry to next layer

    @pl.when(l == pl.num_programs(1) - 1)
    def _():   # final layer: write the slab back to HBM once
        o_ref[0] = y.astype(o_ref.dtype)


# --------------------------------------------------------------------------
# wrappers
# --------------------------------------------------------------------------
def _vmem_limit_bytes(S, D, d_ff, const_bytes, layer_bytes):
    f32, bf16 = 4, 2
    scr = f32 * S * D + bf16 * S * D                       # act carry + pv scratch
    io = 2 * 2 * f32 * S * D + 2 * f32 * S                 # x-in + out (dbl-buf) + mask
    # intermediates incl. bf16 cast copies: qkv, scores, ffn hidden, residual temps
    inter = (f32 + bf16) * S * (3 * D + d_ff + S) + 4 * f32 * S * D
    est = const_bytes + 2 * layer_bytes + scr + io + inter
    try:
        cap = pltpu.get_tpu_info().vmem_capacity_bytes     # 64 MiB v7x, 128 MiB v5e/v6e
    except Exception:
        cap = 128 << 20
    return int(min(max(2 * est, 8 << 20), int(0.72 * cap)))


def user_encoder_forward(params, input_embs, log_mask, n_heads):
    # == User_Encoder.forward(input_embs, log_mask, local_rank) at eval time.
    # local_rank is a torch device id -> no-op in JAX.
    B, S, D = input_embs.shape
    L = params["n_layers"]
    if L == 0:
        return input_embs + params["pos_emb"][None]
    d_ff = params["w1"].shape[-1]
    mask = log_mask.astype(jnp.float32).reshape(B, 1, S)   # raw pad row, mask built in-kernel

    def const_spec(a):
        nd = a.ndim
        # Grid-invariant input: constant index_map; single-buffered (never changes).
        return pl.BlockSpec(a.shape, lambda b, l, nd=nd: (0,) * nd,
                            pipeline_mode=pl.Buffered(1))

    def layer_spec(a):
        # (L, ...) stacked weights; one layer per grid step along the layer axis so the
        # pipeline prefetches layer l+1 weights behind layer l compute.
        nd = a.ndim
        return pl.BlockSpec((1,) + a.shape[1:], lambda b, l, nd=nd: (l,) + (0,) * (nd - 1))

    in_specs = [pl.BlockSpec((1, 1, S), lambda b, l: (b, 0, 0)),   # per-batch pad row
                pl.BlockSpec((1, S, D), lambda b, l: (b, 0, 0)),   # input embeddings
                const_spec(params["pos_emb"]),
                layer_spec(params["vecs"]), layer_spec(params["wqkv"]),
                layer_spec(params["wo"]), layer_spec(params["w1"]),
                layer_spec(params["b1"]), layer_spec(params["w2"])]

    const_bytes = int(params["pos_emb"].size) * params["pos_emb"].dtype.itemsize
    layer_bytes = sum(int(params[k][0].size) * params[k].dtype.itemsize
                      for k in ("vecs", "wqkv", "wo", "w1", "b1", "w2"))

    return pl.pallas_call(
        functools.partial(_encoder_kernel, n_heads=n_heads),
        out_shape=jax.ShapeDtypeStruct((B, S, D), input_embs.dtype),
        grid=(B, L),
        in_specs=in_specs,
        out_specs=pl.BlockSpec((1, S, D), lambda b, l: (b, 0, 0)),
        scratch_shapes=[pltpu.VMEM((S, D), jnp.float32),       # resident activation carry
                        pltpu.VMEM((S, D), COMPUTE_DTYPE)],    # concatenated per-head P@V
        compiler_params=pltpu.CompilerParams(
            dimension_semantics=("parallel", "arbitrary"),
            vmem_limit_bytes=_vmem_limit_bytes(S, D, d_ff, const_bytes, layer_bytes)),
    )(mask, input_embs, params["pos_emb"],
      params["vecs"], params["wqkv"], params["wo"],
      params["w1"], params["b1"], params["w2"])


# --------------------------------------------------------------------------
# deterministic parameter init (mirrors _init_weights: xavier_normal / zeros),
# weights stacked along a leading layer axis for the fused kernel
# --------------------------------------------------------------------------
def _xavier_normal(key, out_f, in_f):
    std = math.sqrt(2.0 / (in_f + out_f))
    return std * jax.random.normal(key, (out_f, in_f), dtype=jnp.float32)


def init_user_encoder_params(key, max_seq_len, item_dim, n_layers,
                             weight_dtype=COMPUTE_DTYPE):
    D = item_dim
    d_ff = 4 * D
    keys = jax.random.split(key, 1 + max(n_layers, 1))
    pos_emb = _xavier_normal(keys[0], max_seq_len, D)       # nn.Embedding weight (S, D)
    vecs, wqkv, wo, w1, b1, w2 = [], [], [], [], [], []
    for li in range(n_layers):
        ks = jax.random.split(keys[1 + li], 6)
        wq = _xavier_normal(ks[0], D, D).T
        wk = _xavier_normal(ks[1], D, D).T
        wv = _xavier_normal(ks[2], D, D).T
        wo_ = _xavier_normal(ks[3], D, D).T
        w1_ = _xavier_normal(ks[4], d_ff, D).T               # (D, 4D)
        w2_ = _xavier_normal(ks[5], D, d_ff).T               # (4D, D)
        v = jnp.zeros((9, D), jnp.float32).at[0].set(1.0).at[6].set(1.0)  # ln gains = 1
        vecs.append(v)
        wqkv.append(jnp.concatenate([wq, wk, wv], axis=1).astype(weight_dtype))  # (D, 3D)
        wo.append(wo_.astype(weight_dtype))
        w1.append(w1_.astype(weight_dtype))
        b1.append(jnp.zeros((1, d_ff), jnp.float32))
        w2.append(w2_.astype(weight_dtype))
    stack = lambda xs: (jnp.stack(xs, axis=0) if xs else None)
    return dict(pos_emb=pos_emb, n_layers=n_layers,
                vecs=stack(vecs), wqkv=stack(wqkv), wo=stack(wo),
                w1=stack(w1), b1=stack(b1), w2=stack(w2))


# --------------------------------------------------------------------------
# pure-jnp reference (same bf16-operand math, exact divides) for correctness
# --------------------------------------------------------------------------
def _reference_forward(params, input_embs, log_mask, n_heads):
    B, S, D = input_embs.shape
    causal = jnp.where(jnp.tril(jnp.ones((S, S), dtype=bool)),
                       0.0, NEG_INF).astype(jnp.float32)
    pad = jnp.where(log_mask != 0.0, 0.0, NEG_INF).astype(jnp.float32)   # (B, S)
    recip = lambda t: 1.0 / t
    outs = []
    for b in range(B):
        x = input_embs[b].astype(jnp.float32) + params["pos_emb"].astype(jnp.float32)
        att_mask = jnp.minimum(causal, pad[b][None, :])
        for li in range(params["n_layers"]):
            x = _block_math(x, att_mask,
                            params["vecs"][li], params["wqkv"][li], params["wo"][li],
                            params["w1"][li], params["b1"][li], params["w2"][li],
                            n_heads=n_heads, recip=recip, pv_buf=None)
        outs.append(x)
    return jnp.stack(outs, axis=0)


if __name__ == "__main__":
    # small shapes: batch=2, seq=8, item_dim=32, heads=2, layers=2
    B, S, D, H, L = 2, 8, 32, 2, 2
    key = jax.random.PRNGKey(0)
    kp, kx = jax.random.split(key)
    params = init_user_encoder_params(kp, max_seq_len=S, item_dim=D, n_layers=L)
    input_embs = jax.random.normal(kx, (B, S, D), dtype=jnp.float32)
    # log_mask: nonzero = valid position (first sequence has 3 padded slots)
    log_mask = jnp.array([[1, 1, 1, 1, 1, 0, 0, 0],
                          [1, 1, 1, 1, 1, 1, 1, 1]], dtype=jnp.float32)

    out = user_encoder_forward(params, input_embs, log_mask, n_heads=H)
    out = jax.block_until_ready(out)

    ref = _reference_forward(params, input_embs, log_mask, n_heads=H)
    assert out.shape == (B, S, D)
    max_err = float(jnp.max(jnp.abs(out - ref)))
    assert jnp.allclose(out, ref, rtol=2e-2, atol=2e-2), max_err
    print("KERNEL_OK")
</pallas_src>

<mosaic_0001>
module attributes {stable_mosaic.version = 11 : i64} {
  func.func @_encoder_kernel(%arg0: i32, %arg1: i32, %arg2: memref<1x1x8xf32, #tpu.memory_space<vmem>>, %arg3: memref<1x8x32xf32, #tpu.memory_space<vmem>>, %arg4: memref<8x32xf32, #tpu.memory_space<vmem>>, %arg5: memref<1x9x32xf32, #tpu.memory_space<vmem>>, %arg6: memref<1x32x96xbf16, #tpu.memory_space<vmem>>, %arg7: memref<1x32x32xbf16, #tpu.memory_space<vmem>>, %arg8: memref<1x32x128xbf16, #tpu.memory_space<vmem>>, %arg9: memref<1x1x128xf32, #tpu.memory_space<vmem>>, %arg10: memref<1x128x32xbf16, #tpu.memory_space<vmem>>, %arg11: memref<1x8x32xf32, #tpu.memory_space<vmem>>, %arg12: memref<8x32xf32, #tpu.memory_space<vmem>>, %arg13: memref<8x32xbf16, #tpu.memory_space<vmem>>) attributes {dimension_semantics = [#tpu.dimension_semantics<parallel>, #tpu.dimension_semantics<arbitrary>], iteration_bounds = array<i64: 2, 2>, scalar_prefetch = 0 : i64, scratch_operands = 2 : i64, tpu.core_type = #tpu.core_type<tc>, window_params = [{transform_indices = @transform_0, window_bounds = array<i64: 1, 1, 8>}, {transform_indices = @transform_1, window_bounds = array<i64: 1, 8, 32>}, {pipeline_mode = #tpu.pipeline_mode<synchronous>, transform_indices = @transform_2, window_bounds = array<i64: 8, 32>}, {transform_indices = @transform_3, window_bounds = array<i64: 1, 9, 32>}, {transform_indices = @transform_4, window_bounds = array<i64: 1, 32, 96>}, {transform_indices = @transform_5, window_bounds = array<i64: 1, 32, 32>}, {transform_indices = @transform_6, window_bounds = array<i64: 1, 32, 128>}, {transform_indices = @transform_7, window_bounds = array<i64: 1, 1, 128>}, {transform_indices = @transform_8, window_bounds = array<i64: 1, 128, 32>}, {transform_indices = @transform_9, window_bounds = array<i64: 1, 8, 32>}]} {
    %c0_i32 = arith.constant 0 : i32
    %0 = arith.cmpi eq, %arg1, %c0_i32 : i32
    %1 = arith.extui %0 : i1 to i32
    %c0_i32_0 = arith.constant 0 : i32
    %2 = arith.cmpi ne, %1, %c0_i32_0 : i32
    scf.if %2 {
      %c0_61 = arith.constant 0 : index
      %c0_62 = arith.constant 0 : index
      %c0_63 = arith.constant 0 : index
      %169 = vector.load %arg3[%c0_61, %c0_62, %c0_63] : memref<1x8x32xf32, #tpu.memory_space<vmem>>, vector<1x8x32xf32>
      %170 = vector.shape_cast %169 : vector<1x8x32xf32> to vector<8x32xf32>
      %c0_64 = arith.constant 0 : index
      %c0_65 = arith.constant 0 : index
      %171 = vector.load %arg4[%c0_64, %c0_65] : memref<8x32xf32, #tpu.memory_space<vmem>>, vector<8x32xf32>
      %172 = arith.addf %170, %171 : vector<8x32xf32>
      %c0_66 = arith.constant 0 : index
      %c0_67 = arith.constant 0 : index
      %173 = vector.load %arg12[%c0_66, %c0_67] : memref<8x32xf32, #tpu.memory_space<vmem>>, vector<8x32xf32>
      tpu.vector_store %arg12[%c0_66, %c0_67], %172 {strides = array<i32>} : memref<8x32xf32, #tpu.memory_space<vmem>>, vector<8x32xf32>,
    } else {
    }
    %3 = tpu.iota {dimensions = array<i32: 0>} : vector<8x8xi32>
    %4 = tpu.iota {dimensions = array<i32: 1>} : vector<8x8xi32>
    %5 = arith.cmpi sge, %3, %4 : vector<8x8xi32>
    %c0 = arith.constant 0 : index
    %c0_1 = arith.constant 0 : index
    %c0_2 = arith.constant 0 : index
    %6 = vector.load %arg2[%c0, %c0_1, %c0_2] : memref<1x1x8xf32, #tpu.memory_space<vmem>>, vector<1x1x8xf32>
    %7 = vector.shape_cast %6 : vector<1x1x8xf32> to vector<1x8xf32>
    %cst = arith.constant 0.000000e+00 : f32
    %8 = vector.broadcast %cst : f32 to vector<1x8xf32>
    %9 = arith.cmpf one, %7, %8 : vector<1x8xf32>
    %10 = vector.broadcast %9 : vector<1x8xi1> to vector<8x8xi1>
    %11 = arith.andi %5, %10 : vector<8x8xi1>
    %cst_3 = arith.constant 0.000000e+00 : f32
    %cst_4 = arith.constant -1.000000e+09 : f32
    %12 = vector.broadcast %cst_3 : f32 to vector<8x8xf32>
    %13 = vector.broadcast %cst_4 : f32 to vector<8x8xf32>
    %14 = arith.select %11, %12, %13 : vector<8x8xi1>, vector<8x8xf32>
    %c0_5 = arith.constant 0 : index
    %c0_6 = arith.constant 0 : index
    %15 = vector.load %arg12[%c0_5, %c0_6] : memref<8x32xf32, #tpu.memory_space<vmem>>, vector<8x32xf32>
    %c0_7 = arith.constant 0 : index
    %c0_8 = arith.constant 0 : index
    %c0_9 = arith.constant 0 : index
    %16 = vector.load %arg5[%c0_7, %c0_8, %c0_9] : memref<1x9x32xf32, #tpu.memory_space<vmem>>, vector<1x9x32xf32>
    %17 = vector.shape_cast %16 : vector<1x9x32xf32> to vector<9x32xf32>
    %c0_10 = arith.constant 0 : index
    %c0_11 = arith.constant 0 : index
    %c0_12 = arith.constant 0 : index
    %18 = vector.load %arg6[%c0_10, %c0_11, %c0_12] : memref<1x32x96xbf16, #tpu.memory_space<vmem>>, vector<1x32x96xbf16>
    %19 = vector.shape_cast %18 : vector<1x32x96xbf16> to vector<32x96xbf16>
    %c0_13 = arith.constant 0 : index
    %c0_14 = arith.constant 0 : index
    %c0_15 = arith.constant 0 : index
    %20 = vector.load %arg7[%c0_13, %c0_14, %c0_15] : memref<1x32x32xbf16, #tpu.memory_space<vmem>>, vector<1x32x32xbf16>
    %21 = vector.shape_cast %20 : vector<1x32x32xbf16> to vector<32x32xbf16>
    %c0_16 = arith.constant 0 : index
    %c0_17 = arith.constant 0 : index
    %c0_18 = arith.constant 0 : index
    %22 = vector.load %arg8[%c0_16, %c0_17, %c0_18] : memref<1x32x128xbf16, #tpu.memory_space<vmem>>, vector<1x32x128xbf16>
    %23 = vector.shape_cast %22 : vector<1x32x128xbf16> to vector<32x128xbf16>
    %c0_19 = arith.constant 0 : index
    %c0_20 = arith.constant 0 : index
    %c0_21 = arith.constant 0 : index
    %24 = vector.load %arg9[%c0_19, %c0_20, %c0_21] : memref<1x1x128xf32, #tpu.memory_space<vmem>>, vector<1x1x128xf32>
    %25 = vector.shape_cast %24 : vector<1x1x128xf32> to vector<1x128xf32>
    %c0_22 = arith.constant 0 : index
    %c0_23 = arith.constant 0 : index
    %c0_24 = arith.constant 0 : index
    %26 = vector.load %arg10[%c0_22, %c0_23, %c0_24] : memref<1x128x32xbf16, #tpu.memory_space<vmem>>, vector<1x128x32xbf16>
    %27 = vector.shape_cast %26 : vector<1x128x32xbf16> to vector<128x32xbf16>
    %28 = vector.extract_strided_slice %17 {offsets = [0, 0], sizes = [1, 32], strides = [1, 1]} : vector<9x32xf32> to vector<1x32xf32>
    %29 = vector.extract_strided_slice %17 {offsets = [1, 0], sizes = [1, 32], strides = [1, 1]} : vector<9x32xf32> to vector<1x32xf32>
    %30 = vector.extract_strided_slice %17 {offsets = [2, 0], sizes = [1, 32], strides = [1, 1]} : vector<9x32xf32> to vector<1x32xf32>
    %31 = vector.extract_strided_slice %17 {offsets = [3, 0], sizes = [1, 32], strides = [1, 1]} : vector<9x32xf32> to vector<1x32xf32>
    %32 = vector.extract_strided_slice %17 {offsets = [4, 0], sizes = [1, 32], strides = [1, 1]} : vector<9x32xf32> to vector<1x32xf32>
    %33 = vector.extract_strided_slice %17 {offsets = [5, 0], sizes = [1, 32], strides = [1, 1]} : vector<9x32xf32> to vector<1x32xf32>
    %34 = vector.extract_strided_slice %17 {offsets = [6, 0], sizes = [1, 32], strides = [1, 1]} : vector<9x32xf32> to vector<1x32xf32>
    %35 = vector.extract_strided_slice %17 {offsets = [7, 0], sizes = [1, 32], strides = [1, 1]} : vector<9x32xf32> to vector<1x32xf32>
    %36 = vector.extract_strided_slice %17 {offsets = [8, 0], sizes = [1, 32], strides = [1, 1]} : vector<9x32xf32> to vector<1x32xf32>
    %cst_25 = arith.constant dense<0.000000e+00> : vector<8xf32>
    %37 = vector.multi_reduction <add>, %15, %cst_25 [1] : vector<8x32xf32> to vector<8xf32>
    %38 = vector.shape_cast %37 : vector<8xf32> to vector<8x1xf32>
    %cst_26 = arith.constant 3.200000e+01 : f32
    %39 = vector.broadcast %cst_26 : f32 to vector<8x1xf32>
    %40 = arith.divf %38, %39 : vector<8x1xf32>
    %41 = vector.broadcast %40 : vector<8x1xf32> to vector<8x32xf32>
    %42 = arith.subf %15, %41 : vector<8x32xf32>
    %43 = arith.mulf %42, %42 : vector<8x32xf32>
    %cst_27 = arith.constant dense<0.000000e+00> : vector<8xf32>
    %44 = vector.multi_reduction <add>, %43, %cst_27 [1] : vector<8x32xf32> to vector<8xf32>
    %45 = vector.shape_cast %44 : vector<8xf32> to vector<8x1xf32>
    %cst_28 = arith.constant 0.0322580636 : f32
    %46 = vector.broadcast %cst_28 : f32 to vector<8x1xf32>
    %47 = arith.mulf %45, %46 : vector<8x1xf32>
    %48 = math.sqrt %47 : vector<8x1xf32>
    %49 = vector.broadcast %28 : vector<1x32xf32> to vector<8x32xf32>
    %50 = arith.mulf %49, %42 : vector<8x32xf32>
    %cst_29 = arith.constant 9.99999997E-7 : f32
    %51 = vector.broadcast %cst_29 : f32 to vector<8x1xf32>
    %52 = arith.addf %48, %51 : vector<8x1xf32>
    %53 = tpu.reciprocal %52 {approx = true} : vector<8x1xf32> -> vector<8x1xf32>
    %54 = vector.broadcast %53 : vector<8x1xf32> to vector<8x32xf32>
    %55 = arith.mulf %50, %54 : vector<8x32xf32>
    %56 = vector.broadcast %29 : vector<1x32xf32> to vector<8x32xf32>
    %57 = arith.addf %55, %56 : vector<8x32xf32>
    %58 = arith.truncf %57 : vector<8x32xf32> to vector<8x32xbf16>
    %cst_30 = arith.constant dense<0.000000e+00> : vector<8x96xf32>
    %59 = tpu.matmul %58, %19, %cst_30 {dimension_numbers = #tpu.dot_dimension_numbers<[1], [0], [0], [1], [0, 0, 1, 1], [], []>} : vector<8x32xbf16>, vector<32x96xbf16>, vector<8x96xf32> -> vector<8x96xf32>
    %60 = vector.extract_strided_slice %59 {offsets = [0, 0], sizes = [8, 32], strides = [1, 1]} : vector<8x96xf32> to vector<8x32xf32>
    %61 = vector.broadcast %30 : vector<1x32xf32> to vector<8x32xf32>
    %62 = arith.addf %60, %61 : vector<8x32xf32>
    %63 = vector.extract_strided_slice %59 {offsets = [0, 32], sizes = [8, 32], strides = [1, 1]} : vector<8x96xf32> to vector<8x32xf32>
    %64 = vector.broadcast %31 : vector<1x32xf32> to vector<8x32xf32>
    %65 = arith.addf %63, %64 : vector<8x32xf32>
    %66 = vector.extract_strided_slice %59 {offsets = [0, 64], sizes = [8, 32], strides = [1, 1]} : vector<8x96xf32> to vector<8x32xf32>
    %67 = vector.broadcast %32 : vector<1x32xf32> to vector<8x32xf32>
    %68 = arith.addf %66, %67 : vector<8x32xf32>
    %69 = vector.extract_strided_slice %62 {offsets = [0, 0], sizes = [8, 16], strides = [1, 1]} : vector<8x32xf32> to vector<8x16xf32>
    %70 = vector.extract_strided_slice %65 {offsets = [0, 0], sizes = [8, 16], strides = [1, 1]} : vector<8x32xf32> to vector<8x16xf32>
    %71 = arith.truncf %69 : vector<8x16xf32> to vector<8x16xbf16>
    %72 = arith.truncf %70 : vector<8x16xf32> to vector<8x16xbf16>
    %cst_31 = arith.constant dense<0.000000e+00> : vector<8x8xf32>
    %73 = tpu.matmul %71, %72, %cst_31 {dimension_numbers = #tpu.dot_dimension_numbers<[1], [1], [0], [0], [0, 0, 1, 0], [], []>} : vector<8x16xbf16>, vector<8x16xbf16>, vector<8x8xf32> -> vector<8x8xf32>
    %cst_32 = arith.constant 2.500000e-01 : f32
    %74 = vector.broadcast %cst_32 : f32 to vector<8x8xf32>
    %75 = arith.mulf %73, %74 : vector<8x8xf32>
    %76 = arith.addf %75, %14 : vector<8x8xf32>
    %cst_33 = arith.constant dense<0xFF800000> : vector<8xf32>
    %77 = vector.multi_reduction <maximumf>, %76, %cst_33 [1] : vector<8x8xf32> to vector<8xf32>
    %78 = vector.shape_cast %77 : vector<8xf32> to vector<8x1xf32>
    %79 = vector.broadcast %78 : vector<8x1xf32> to vector<8x8xf32>
    %80 = arith.subf %76, %79 : vector<8x8xf32>
    %81 = math.exp %80 : vector<8x8xf32>
    %cst_34 = arith.constant dense<0.000000e+00> : vector<8xf32>
    %82 = vector.multi_reduction <add>, %81, %cst_34 [1] : vector<8x8xf32> to vector<8xf32>
    %83 = vector.shape_cast %82 : vector<8xf32> to vector<8x1xf32>
    %84 = tpu.reciprocal %83 {approx = true} : vector<8x1xf32> -> vector<8x1xf32>
    %85 = vector.broadcast %84 : vector<8x1xf32> to vector<8x8xf32>
    %86 = arith.mulf %81, %85 : vector<8x8xf32>
    %87 = vector.extract_strided_slice %68 {offsets = [0, 0], sizes = [8, 16], strides = [1, 1]} : vector<8x32xf32> to vector<8x16xf32>
    %88 = arith.truncf %86 : vector<8x8xf32> to vector<8x8xbf16>
    %89 = arith.truncf %87 : vector<8x16xf32> to vector<8x16xbf16>
    %cst_35 = arith.constant dense<0.000000e+00> : vector<8x16xf32>
    %90 = tpu.matmul %88, %89, %cst_35 {dimension_numbers = #tpu.dot_dimension_numbers<[1], [0], [0], [1], [0, 0, 1, 1], [], []>} : vector<8x8xbf16>, vector<8x16xbf16>, vector<8x16xf32> -> vector<8x16xf32>
    %91 = arith.truncf %90 : vector<8x16xf32> to vector<8x16xbf16>
    %c0_36 = arith.constant 0 : index
    %c0_37 = arith.constant 0 : index
    %92 = vector.load %arg13[%c0_36, %c0_37] : memref<8x32xbf16, #tpu.memory_space<vmem>>, vector<8x16xbf16>
    tpu.vector_store %arg13[%c0_36, %c0_37], %91 {strides = array<i32>} : memref<8x32xbf16, #tpu.memory_space<vmem>>, vector<8x16xbf16>,
    %93 = vector.extract_strided_slice %62 {offsets = [0, 16], sizes = [8, 16], strides = [1, 1]} : vector<8x32xf32> to vector<8x16xf32>
    %94 = vector.extract_strided_slice %65 {offsets = [0, 16], sizes = [8, 16], strides = [1, 1]} : vector<8x32xf32> to vector<8x16xf32>
    %95 = arith.truncf %93 : vector<8x16xf32> to vector<8x16xbf16>
    %96 = arith.truncf %94 : vector<8x16xf32> to vector<8x16xbf16>
    %cst_38 = arith.constant dense<0.000000e+00> : vector<8x8xf32>
    %97 = tpu.matmul %95, %96, %cst_38 {dimension_numbers = #tpu.dot_dimension_numbers<[1], [1], [0], [0], [0, 0, 1, 0], [], []>} : vector<8x16xbf16>, vector<8x16xbf16>, vector<8x8xf32> -> vector<8x8xf32>
    %cst_39 = arith.constant 2.500000e-01 : f32
    %98 = vector.broadcast %cst_39 : f32 to vector<8x8xf32>
    %99 = arith.mulf %97, %98 : vector<8x8xf32>
    %100 = arith.addf %99, %14 : vector<8x8xf32>
    %cst_40 = arith.constant dense<0xFF800000> : vector<8xf32>
    %101 = vector.multi_reduction <maximumf>, %100, %cst_40 [1] : vector<8x8xf32> to vector<8xf32>
    %102 = vector.shape_cast %101 : vector<8xf32> to vector<8x1xf32>
    %103 = vector.broadcast %102 : vector<8x1xf32> to vector<8x8xf32>
    %104 = arith.subf %100, %103 : vector<8x8xf32>
    %105 = math.exp %104 : vector<8x8xf32>
    %cst_41 = arith.constant dense<0.000000e+00> : vector<8xf32>
    %106 = vector.multi_reduction <add>, %105, %cst_41 [1] : vector<8x8xf32> to vector<8xf32>
    %107 = vector.shape_cast %106 : vector<8xf32> to vector<8x1xf32>
    %108 = tpu.reciprocal %107 {approx = true} : vector<8x1xf32> -> vector<8x1xf32>
    %109 = vector.broadcast %108 : vector<8x1xf32> to vector<8x8xf32>
    %110 = arith.mulf %105, %109 : vector<8x8xf32>
    %111 = vector.extract_strided_slice %68 {offsets = [0, 16], sizes = [8, 16], strides = [1, 1]} : vector<8x32xf32> to vector<8x16xf32>
    %112 = arith.truncf %110 : vector<8x8xf32> to vector<8x8xbf16>
    %113 = arith.truncf %111 : vector<8x16xf32> to vector<8x16xbf16>
    %cst_42 = arith.constant dense<0.000000e+00> : vector<8x16xf32>
    %114 = tpu.matmul %112, %113, %cst_42 {dimension_numbers = #tpu.dot_dimension_numbers<[1], [0], [0], [1], [0, 0, 1, 1], [], []>} : vector<8x8xbf16>, vector<8x16xbf16>, vector<8x16xf32> -> vector<8x16xf32>
    %115 = arith.truncf %114 : vector<8x16xf32> to vector<8x16xbf16>
    %c0_43 = arith.constant 0 : index
    %c16 = arith.constant 16 : index
    %116 = vector.load %arg13[%c0_43, %c16] : memref<8x32xbf16, #tpu.memory_space<vmem>>, vector<8x16xbf16>
    tpu.vector_store %arg13[%c0_43, %c16], %115 {strides = array<i32>} : memref<8x32xbf16, #tpu.memory_space<vmem>>, vector<8x16xbf16>,
    %c0_44 = arith.constant 0 : index
    %c0_45 = arith.constant 0 : index
    %117 = vector.load %arg13[%c0_44, %c0_45] : memref<8x32xbf16, #tpu.memory_space<vmem>>, vector<8x32xbf16>
    %cst_46 = arith.constant dense<0.000000e+00> : vector<8x32xf32>
    %118 = tpu.matmul %117, %21, %cst_46 {dimension_numbers = #tpu.dot_dimension_numbers<[1], [0], [0], [1], [0, 0, 1, 1], [], []>} : vector<8x32xbf16>, vector<32x32xbf16>, vector<8x32xf32> -> vector<8x32xf32>
    %119 = arith.addf %15, %118 : vector<8x32xf32>
    %120 = vector.broadcast %33 : vector<1x32xf32> to vector<8x32xf32>
    %121 = arith.addf %119, %120 : vector<8x32xf32>
    %cst_47 = arith.constant dense<0.000000e+00> : vector<8xf32>
    %122 = vector.multi_reduction <add>, %121, %cst_47 [1] : vector<8x32xf32> to vector<8xf32>
    %123 = vector.shape_cast %122 : vector<8xf32> to vector<8x1xf32>
    %cst_48 = arith.constant 3.200000e+01 : f32
    %124 = vector.broadcast %cst_48 : f32 to vector<8x1xf32>
    %125 = arith.divf %123, %124 : vector<8x1xf32>
    %126 = vector.broadcast %125 : vector<8x1xf32> to vector<8x32xf32>
    %127 = arith.subf %121, %126 : vector<8x32xf32>
    %128 = arith.mulf %127, %127 : vector<8x32xf32>
    %cst_49 = arith.constant dense<0.000000e+00> : vector<8xf32>
    %129 = vector.multi_reduction <add>, %128, %cst_49 [1] : vector<8x32xf32> to vector<8xf32>
    %130 = vector.shape_cast %129 : vector<8xf32> to vector<8x1xf32>
    %cst_50 = arith.constant 0.0322580636 : f32
    %131 = vector.broadcast %cst_50 : f32 to vector<8x1xf32>
    %132 = arith.mulf %130, %131 : vector<8x1xf32>
    %133 = math.sqrt %132 : vector<8x1xf32>
    %134 = vector.broadcast %34 : vector<1x32xf32> to vector<8x32xf32>
    %135 = arith.mulf %134, %127 : vector<8x32xf32>
    %cst_51 = arith.constant 9.99999997E-7 : f32
    %136 = vector.broadcast %cst_51 : f32 to vector<8x1xf32>
    %137 = arith.addf %133, %136 : vector<8x1xf32>
    %138 = tpu.reciprocal %137 {approx = true} : vector<8x1xf32> -> vector<8x1xf32>
    %139 = vector.broadcast %138 : vector<8x1xf32> to vector<8x32xf32>
    %140 = arith.mulf %135, %139 : vector<8x32xf32>
    %141 = vector.broadcast %35 : vector<1x32xf32> to vector<8x32xf32>
    %142 = arith.addf %140, %141 : vector<8x32xf32>
    %143 = arith.truncf %142 : vector<8x32xf32> to vector<8x32xbf16>
    %cst_52 = arith.constant dense<0.000000e+00> : vector<8x128xf32>
    %144 = tpu.matmul %143, %23, %cst_52 {dimension_numbers = #tpu.dot_dimension_numbers<[1], [0], [0], [1], [0, 0, 1, 1], [], []>} : vector<8x32xbf16>, vector<32x128xbf16>, vector<8x128xf32> -> vector<8x128xf32>
    %145 = vector.broadcast %25 : vector<1x128xf32> to vector<8x128xf32>
    %146 = arith.addf %144, %145 : vector<8x128xf32>
    %cst_53 = arith.constant 5.000000e-01 : f32
    %147 = vector.broadcast %cst_53 : f32 to vector<8x128xf32>
    %148 = arith.mulf %147, %146 : vector<8x128xf32>
    %cst_54 = arith.constant 4.471500e-02 : f32
    %149 = vector.broadcast %cst_54 : f32 to vector<8x128xf32>
    %150 = arith.mulf %149, %146 : vector<8x128xf32>
    %151 = arith.mulf %150, %146 : vector<8x128xf32>
    %152 = arith.mulf %151, %146 : vector<8x128xf32>
    %153 = arith.addf %146, %152 : vector<8x128xf32>
    %cst_55 = arith.constant 0.797884583 : f32
    %154 = vector.broadcast %cst_55 : f32 to vector<8x128xf32>
    %155 = arith.mulf %154, %153 : vector<8x128xf32>
    %156 = math.tanh %155 : vector<8x128xf32>
    %cst_56 = arith.constant 1.000000e+00 : f32
    %157 = vector.broadcast %cst_56 : f32 to vector<8x128xf32>
    %158 = arith.addf %157, %156 : vector<8x128xf32>
    %159 = arith.mulf %148, %158 : vector<8x128xf32>
    %160 = arith.truncf %159 : vector<8x128xf32> to vector<8x128xbf16>
    %cst_57 = arith.constant dense<0.000000e+00> : vector<8x32xf32>
    %161 = tpu.matmul %160, %27, %cst_57 {dimension_numbers = #tpu.dot_dimension_numbers<[1], [0], [0], [1], [0, 0, 1, 1], [], []>} : vector<8x128xbf16>, vector<128x32xbf16>, vector<8x32xf32> -> vector<8x32xf32>
    %162 = arith.addf %121, %161 : vector<8x32xf32>
    %163 = vector.broadcast %36 : vector<1x32xf32> to vector<8x32xf32>
    %164 = arith.addf %162, %163 : vector<8x32xf32>
    %c0_58 = arith.constant 0 : index
    %c0_59 = arith.constant 0 : index
    %165 = vector.load %arg12[%c0_58, %c0_59] : memref<8x32xf32, #tpu.memory_space<vmem>>, vector<8x32xf32>
    tpu.vector_store %arg12[%c0_58, %c0_59], %164 {strides = array<i32>} : memref<8x32xf32, #tpu.memory_space<vmem>>, vector<8x32xf32>,
    %c1_i32 = arith.constant 1 : i32
    %166 = arith.cmpi eq, %arg1, %c1_i32 : i32
    %167 = arith.extui %166 : i1 to i32
    %c0_i32_60 = arith.constant 0 : i32
    %168 = arith.cmpi ne, %167, %c0_i32_60 : i32
    scf.if %168 {
      %c0_61 = arith.constant 0 : index
      %c0_62 = arith.constant 0 : index
      %c0_63 = arith.constant 0 : index
      %169 = vector.load %arg11[%c0_61, %c0_62, %c0_63] : memref<1x8x32xf32, #tpu.memory_space<vmem>>, vector<1x8x32xf32>
      %170 = vector.shape_cast %169 : vector<1x8x32xf32> to vector<8x32xf32>
      %171 = vector.shape_cast %164 : vector<8x32xf32> to vector<1x8x32xf32>
      tpu.vector_store %arg11[%c0_61, %c0_62, %c0_63], %171 {strides = array<i32>} : memref<1x8x32xf32, #tpu.memory_space<vmem>>, vector<1x8x32xf32>,
    } else {
    }
    return
  }
  func.func @transform_0(%arg0: i32, %arg1: i32) -> (i32, i32, i32) {
    %c0_i32 = arith.constant 0 : i32
    %c0_i32_0 = arith.constant 0 : i32
    %c0_i32_1 = arith.constant 0 : i32
    return %arg0, %c0_i32, %c0_i32_0 : i32, i32, i32
  }
  func.func @transform_1(%arg0: i32, %arg1: i32) -> (i32, i32, i32) {
    %c0_i32 = arith.constant 0 : i32
    %c0_i32_0 = arith.constant 0 : i32
    %c0_i32_1 = arith.constant 0 : i32
    return %arg0, %c0_i32, %c0_i32_0 : i32, i32, i32
  }
  func.func @transform_2(%arg0: i32, %arg1: i32) -> (i32, i32) {
    %c0_i32 = arith.constant 0 : i32
    %c0_i32_0 = arith.constant 0 : i32
    %c0_i32_1 = arith.constant 0 : i32
    return %c0_i32, %c0_i32_0 : i32, i32
  }
  func.func @transform_3(%arg0: i32, %arg1: i32) -> (i32, i32, i32) {
    %c0_i32 = arith.constant 0 : i32
    %c0_i32_0 = arith.constant 0 : i32
    %c0_i32_1 = arith.constant 0 : i32
    return %arg1, %c0_i32, %c0_i32_0 : i32, i32, i32
  }
  func.func @transform_4(%arg0: i32, %arg1: i32) -> (i32, i32, i32) {
    %c0_i32 = arith.constant 0 : i32
    %c0_i32_0 = arith.constant 0 : i32
    %c0_i32_1 = arith.constant 0 : i32
    return %arg1, %c0_i32, %c0_i32_0 : i32, i32, i32
  }
  func.func @transform_5(%arg0: i32, %arg1: i32) -> (i32, i32, i32) {
    %c0_i32 = arith.constant 0 : i32
    %c0_i32_0 = arith.constant 0 : i32
    %c0_i32_1 = arith.constant 0 : i32
    return %arg1, %c0_i32, %c0_i32_0 : i32, i32, i32
  }
  func.func @transform_6(%arg0: i32, %arg1: i32) -> (i32, i32, i32) {
    %c0_i32 = arith.constant 0 : i32
    %c0_i32_0 = arith.constant 0 : i32
    %c0_i32_1 = arith.constant 0 : i32
    return %arg1, %c0_i32, %c0_i32_0 : i32, i32, i32
  }
  func.func @transform_7(%arg0: i32, %arg1: i32) -> (i32, i32, i32) {
    %c0_i32 = arith.constant 0 : i32
    %c0_i32_0 = arith.constant 0 : i32
    %c0_i32_1 = arith.constant 0 : i32
    return %arg1, %c0_i32, %c0_i32_0 : i32, i32, i32
  }
  func.func @transform_8(%arg0: i32, %arg1: i32) -> (i32, i32, i32) {
    %c0_i32 = arith.constant 0 : i32
    %c0_i32_0 = arith.constant 0 : i32
    %c0_i32_1 = arith.constant 0 : i32
    return %arg1, %c0_i32, %c0_i32_0 : i32, i32, i32
  }
  func.func @transform_9(%arg0: i32, %arg1: i32) -> (i32, i32, i32) {
    %c0_i32 = arith.constant 0 : i32
    %c0_i32_0 = arith.constant 0 : i32
    %c0_i32_1 = arith.constant 0 : i32
    return %arg0, %c0_i32, %c0_i32_0 : i32, i32, i32
  }
}

</mosaic_0001>

<llo_original>
// kernel: tpu_custom_call.1
$region0: #{tpu_custom_call.1}
  #allocation0 [shape = 'u32[]', space=smem, size = 0x4, offset = 0x4, fixed_abs, tag = 'smem constant byte address 0x4 - core index']
  #allocation1 [shape = 'u32[72,128]{1,0:T(1,128)}', space=vmem, size = 0x9000, scoped, tag = 'internal scratch']
  #allocation2 [shape = 'f32[8,32]{1,0:T(8,128)}', space=vmem, size = 0x1000, scoped, tag = 'scratch operand']
  #allocation3 [shape = 'bf16[8,32]{1,0:T(8,128)(2,1)}', space=vmem, size = 0x800, scoped, tag = 'scratch operand']
  %s0 = inlined_call_operand.vmem [shape: f32[2,1,8], index: 0, kind: input, shape index: {}]
  %s1 = inlined_call_operand.vmem [shape: f32[2,8,32], index: 1, kind: input, shape index: {}]
  %s2 = inlined_call_operand.vmem [shape: f32[8,32], index: 2, kind: input, shape index: {}]
  %s3 = inlined_call_operand.vmem [shape: f32[2,9,32], index: 3, kind: input, shape index: {}]
  %s4 = inlined_call_operand.vmem [shape: bf16[2,32,96], index: 4, kind: input, shape index: {}]
  %s5 = inlined_call_operand.vmem [shape: bf16[2,32,32], index: 5, kind: input, shape index: {}]
  %s6 = inlined_call_operand.vmem [shape: bf16[2,32,128], index: 6, kind: input, shape index: {}]
  %s7 = inlined_call_operand.vmem [shape: f32[2,1,128], index: 7, kind: input, shape index: {}]
  %s8 = inlined_call_operand.vmem [shape: bf16[2,128,32], index: 8, kind: input, shape index: {}]
  %s9 = inlined_call_operand.hbm [shape: f32[2,8,32], index: 9, kind: output, shape index: {}]
  %s10 = sld [smem:[#allocation0]]
  $region77: #{tpu_custom_call.1} parent=0
    _
  %s12 = ssub.s32 1, %s10
  %s13 = scalar_select 0, %s12, %s10
  $region1: #{tpu_custom_call.1} parent=0
    #allocation4 [shape = 'u8[8192]{0}', space=vmem, size = 0x2000, scoped, tag = 'output window, operand 0']
    #allocation5 [shape = 's32[2]{0}', space=sflag, size = 0x8, scoped, tag = 'scoped memory for tpu_custom_call.1']
    %14 = vsyncpa [#allocation5], 0
    %s15 = scalar_lea.sflag [#allocation5], 1
    %16 = vsyncpa %s15, 0
    loop: start=0, step=1, limit=6
    $region2: #{tpu_custom_call.1} parent=1 // loop_pre_header
      _
    $region3: #{tpu_custom_call.1} parent=1 // loop_header
      %s18 = sphi 0, %s22
      %p19 = scmp.ge.s32.totalorder %s18, 6
      %s25 = sphi 0, %s37
      %s26 = sphi 0, %s33
      %s27 = sphi 0, %s25
      %s28 = sphi 0, %s26
      %s29 = sphi 0, %s27
      %s30 = sphi 0, %s28
      %s40 = sphi 0, %s42
      %s43 = sphi 0, %s40
      %s44 = sphi 0, %s43
      %s60 = sphi 0, %s44
      %s66 = sphi 0, %s68
      %s69 = sphi 0, %s66
      %s70 = sphi 0, %s69
      %s86 = sphi 0, %s70
      %s90 = sphi 0, %s90
      %s92 = sphi 0, %s90
      %s93 = sphi 0, %s92
      %s107 = sphi 0, %s93
      %s113 = sphi 0, %s115
      %s116 = sphi 0, %s113
      %s117 = sphi 0, %s116
      %s133 = sphi 0, %s117
      %s139 = sphi 0, %s141
      %s142 = sphi 0, %s139
      %s143 = sphi 0, %s142
      %s159 = sphi 0, %s143
      %s165 = sphi 0, %s167
      %s168 = sphi 0, %s165
      %s169 = sphi 0, %s168
      %s185 = sphi 0, %s169
      %s191 = sphi 0, %s193
      %s194 = sphi 0, %s191
      %s195 = sphi 0, %s194
      %s211 = sphi 0, %s195
      %s217 = sphi 0, %s219
      %s220 = sphi 0, %s217
      %s221 = sphi 0, %s220
      %s237 = sphi 0, %s221
      %s243 = sphi 0, %s245
      %s246 = sphi 0, %s243
      %s247 = sphi 0, %s246
      %s263 = sphi 0, %s247
      %s269 = sphi 0, %s271
      %s272 = sphi 0, %s269
      %s273 = sphi 0, %s272
      %s289 = sphi 0, %s273
    $region4: #{tpu_custom_call.1} parent=1 // loop_header_branch
      %21 = sbr.rel (%p19) target = $region8
    $region5: #{tpu_custom_call.1} parent=1 // loop_body
      %s23 = ssub.s32 %s18, 1
      %s24 = ssub.s32 %s18, 2
      %s31 = sadd.s32 1, %s26
      %p32 = scmp.ge.s32.totalorder %s31, 2
      %s33 = scalar_select %p32, 0, %s31
      %s34 = sadd.s32 1, %s25
      %s35 = scalar_select %p32, %s34, %s25
      %p36 = scmp.ge.s32.totalorder %s35, 2
      %s37 = scalar_select %p36, 0, %s35
      %s38 = ssub.s32 %s25, %s37
      %p39 = scmp.eq.s32.totalorder %s38, 0
      %s41 = sadd.s32 %s40, 1
      %s42 = scalar_select %p39, %s40, %s41
      %p45 = pneg %p39
      %p46 = scmp.eq.s32.totalorder %s18, 3
      %p47 = por %p45, %p46
      %p48 = scmp.ne.s32.totalorder %s40, %s43
      %p49 = scmp.eq.s32.totalorder %s18, 0
      %p50 = por %p48, %p49
      %p51 = scmp.ne.s32.totalorder %s40, %s43
      %p52 = scmp.eq.s32.totalorder %s23, 3
      %p53 = por %p51, %p52
      %p54 = scmp.ne.s32.totalorder %s43, %s44
      %p55 = scmp.eq.s32.totalorder %s23, 0
      %p56 = por %p54, %p55
      %p57 = scmp.ne.s32.totalorder %s43, %s44
      %p58 = scmp.eq.s32.totalorder %s24, 3
      %p59 = por %p57, %p58
      %p61 = scmp.ne.s32.totalorder %s44, %s60
      %p62 = scmp.eq.s32.totalorder %s24, 0
      %p63 = por %p61, %p62
      %s64 = ssub.s32 %s25, %s37
      %p65 = scmp.eq.s32.totalorder %s64, 0
      %s67 = sadd.s32 %s66, 1
      %s68 = scalar_select %p65, %s66, %s67
      %p71 = pneg %p65
      %p72 = scmp.eq.s32.totalorder %s18, 3
      %p73 = por %p71, %p72
      %p74 = scmp.ne.s32.totalorder %s66, %s69
      %p75 = scmp.eq.s32.totalorder %s18, 0
      %p76 = por %p74, %p75
      %p77 = scmp.ne.s32.totalorder %s66, %s69
      %p78 = scmp.eq.s32.totalorder %s23, 3
      %p79 = por %p77, %p78
      %p80 = scmp.ne.s32.totalorder %s69, %s70
      %p81 = scmp.eq.s32.totalorder %s23, 0
      %p82 = por %p80, %p81
      %p83 = scmp.ne.s32.totalorder %s69, %s70
      %p84 = scmp.eq.s32.totalorder %s24, 3
      %p85 = por %p83, %p84
      %p87 = scmp.ne.s32.totalorder %s70, %s86
      %p88 = scmp.eq.s32.totalorder %s24, 0
      %p89 = por %p87, %p88
      %s91 = sadd.s32 %s90, 1
      %p94 = scmp.eq.s32.totalorder %s18, 3
      %p95 = scmp.ne.s32.totalorder %s90, %s92
      %p96 = scmp.eq.s32.totalorder %s18, 0
      %p97 = por %p95, %p96
      %p98 = scmp.ne.s32.totalorder %s90, %s92
      %p99 = scmp.eq.s32.totalorder %s23, 3
      %p100 = por %p98, %p99
      %p101 = scmp.ne.s32.totalorder %s92, %s93
      %p102 = scmp.eq.s32.totalorder %s23, 0
      %p103 = por %p101, %p102
      %p104 = scmp.ne.s32.totalorder %s92, %s93
      %p105 = scmp.eq.s32.totalorder %s24, 3
      %p106 = por %p104, %p105
      %p108 = scmp.ne.s32.totalorder %s93, %s107
      %p109 = scmp.eq.s32.totalorder %s24, 0
      %p110 = por %p108, %p109
      %s111 = ssub.s32 %s26, %s33
      %p112 = scmp.eq.s32.totalorder %s111, 0
      %s114 = sadd.s32 %s113, 1
      %s115 = scalar_select %p112, %s113, %s114
      %p118 = pneg %p112
      %p119 = scmp.eq.s32.totalorder %s18, 3
      %p120 = por %p118, %p119
      %p121 = scmp.ne.s32.totalorder %s113, %s116
      %p122 = scmp.eq.s32.totalorder %s18, 0
      %p123 = por %p121, %p122
      %p124 = scmp.ne.s32.totalorder %s113, %s116
      %p125 = scmp.eq.s32.totalorder %s23, 3
      %p126 = por %p124, %p125
      %p127 = scmp.ne.s32.totalorder %s116, %s117
      %p128 = scmp.eq.s32.totalorder %s23, 0
      %p129 = por %p127, %p128
      %p130 = scmp.ne.s32.totalorder %s116, %s117
      %p131 = scmp.eq.s32.totalorder %s24, 3
      %p132 = por %p130, %p131
      %p134 = scmp.ne.s32.totalorder %s117, %s133
      %p135 = scmp.eq.s32.totalorder %s24, 0
      %p136 = por %p134, %p135
      %s137 = ssub.s32 %s26, %s33
      %p138 = scmp.eq.s32.totalorder %s137, 0
      %s140 = sadd.s32 %s139, 1
      %s141 = scalar_select %p138, %s139, %s140
      %p144 = pneg %p138
      %p145 = scmp.eq.s32.totalorder %s18, 3
      %p146 = por %p144, %p145
      %p147 = scmp.ne.s32.totalorder %s139, %s142
      %p148 = scmp.eq.s32.totalorder %s18, 0
      %p149 = por %p147, %p148
      %p150 = scmp.ne.s32.totalorder %s139, %s142
      %p151 = scmp.eq.s32.totalorder %s23, 3
      %p152 = por %p150, %p151
      %p153 = scmp.ne.s32.totalorder %s142, %s143
      %p154 = scmp.eq.s32.totalorder %s23, 0
      %p155 = por %p153, %p154
      %p156 = scmp.ne.s32.totalorder %s142, %s143
      %p157 = scmp.eq.s32.totalorder %s24, 3
      %p158 = por %p156, %p157
      %p160 = scmp.ne.s32.totalorder %s143, %s159
      %p161 = scmp.eq.s32.totalorder %s24, 0
      %p162 = por %p160, %p161
      %s163 = ssub.s32 %s26, %s33
      %p164 = scmp.eq.s32.totalorder %s163, 0
      %s166 = sadd.s32 %s165, 1
      %s167 = scalar_select %p164, %s165, %s166
      %p170 = pneg %p164
      %p171 = scmp.eq.s32.totalorder %s18, 3
      %p172 = por %p170, %p171
      %p173 = scmp.ne.s32.totalorder %s165, %s168
      %p174 = scmp.eq.s32.totalorder %s18, 0
      %p175 = por %p173, %p174
      %p176 = scmp.ne.s32.totalorder %s165, %s168
      %p177 = scmp.eq.s32.totalorder %s23, 3
      %p178 = por %p176, %p177
      %p179 = scmp.ne.s32.totalorder %s168, %s169
      %p180 = scmp.eq.s32.totalorder %s23, 0
      %p181 = por %p179, %p180
      %p182 = scmp.ne.s32.totalorder %s168, %s169
      %p183 = scmp.eq.s32.totalorder %s24, 3
      %p184 = por %p182, %p183
      %p186 = scmp.ne.s32.totalorder %s169, %s185
      %p187 = scmp.eq.s32.totalorder %s24, 0
      %p188 = por %p186, %p187
      %s189 = ssub.s32 %s26, %s33
      %p190 = scmp.eq.s32.totalorder %s189, 0
      %s192 = sadd.s32 %s191, 1
      %s193 = scalar_select %p190, %s191, %s192
      %p196 = pneg %p190
      %p197 = scmp.eq.s32.totalorder %s18, 3
      %p198 = por %p196, %p197
      %p199 = scmp.ne.s32.totalorder %s191, %s194
      %p200 = scmp.eq.s32.totalorder %s18, 0
      %p201 = por %p199, %p200
      %p202 = scmp.ne.s32.totalorder %s191, %s194
      %p203 = scmp.eq.s32.totalorder %s23, 3
      %p204 = por %p202, %p203
      %p205 = scmp.ne.s32.totalorder %s194, %s195
      %p206 = scmp.eq.s32.totalorder %s23, 0
      %p207 = por %p205, %p206
      %p208 = scmp.ne.s32.totalorder %s194, %s195
      %p209 = scmp.eq.s32.totalorder %s24, 3
      %p210 = por %p208, %p209
      %p212 = scmp.ne.s32.totalorder %s195, %s211
      %p213 = scmp.eq.s32.totalorder %s24, 0
      %p214 = por %p212, %p213
      %s215 = ssub.s32 %s26, %s33
      %p216 = scmp.eq.s32.totalorder %s215, 0
      %s218 = sadd.s32 %s217, 1
      %s219 = scalar_select %p216, %s217, %s218
      %p222 = pneg %p216
      %p223 = scmp.eq.s32.totalorder %s18, 3
      %p224 = por %p222, %p223
      %p225 = scmp.ne.s32.totalorder %s217, %s220
      %p226 = scmp.eq.s32.totalorder %s18, 0
      %p227 = por %p225, %p226
      %p228 = scmp.ne.s32.totalorder %s217, %s220
      %p229 = scmp.eq.s32.totalorder %s23, 3
      %p230 = por %p228, %p229
      %p231 = scmp.ne.s32.totalorder %s220, %s221
      %p232 = scmp.eq.s32.totalorder %s23, 0
      %p233 = por %p231, %p232
      %p234 = scmp.ne.s32.totalorder %s220, %s221
      %p235 = scmp.eq.s32.totalorder %s24, 3
      %p236 = por %p234, %p235
      %p238 = scmp.ne.s32.totalorder %s221, %s237
      %p239 = scmp.eq.s32.totalorder %s24, 0
      %p240 = por %p238, %p239
      %s241 = ssub.s32 %s26, %s33
      %p242 = scmp.eq.s32.totalorder %s241, 0
      %s244 = sadd.s32 %s243, 1
      %s245 = scalar_select %p242, %s243, %s244
      %p248 = pneg %p242
      %p249 = scmp.eq.s32.totalorder %s18, 3
      %p250 = por %p248, %p249
      %p251 = scmp.ne.s32.totalorder %s243, %s246
      %p252 = scmp.eq.s32.totalorder %s18, 0
      %p253 = por %p251, %p252
      %p254 = scmp.ne.s32.totalorder %s243, %s246
      %p255 = scmp.eq.s32.totalorder %s23, 3
      %p256 = por %p254, %p255
      %p257 = scmp.ne.s32.totalorder %s246, %s247
      %p258 = scmp.eq.s32.totalorder %s23, 0
      %p259 = por %p257, %p258
      %p260 = scmp.ne.s32.totalorder %s246, %s247
      %p261 = scmp.eq.s32.totalorder %s24, 3
      %p262 = por %p260, %p261
      %p264 = scmp.ne.s32.totalorder %s247, %s263
      %p265 = scmp.eq.s32.totalorder %s24, 0
      %p266 = por %p264, %p265
      %s267 = ssub.s32 %s25, %s37
      %p268 = scmp.eq.s32.totalorder %s267, 0
      %s270 = sadd.s32 %s269, 1
      %s271 = scalar_select %p268, %s269, %s270
      %p274 = pneg %p268
      %p275 = scmp.eq.s32.totalorder %s18, 3
      %p276 = por %p274, %p275
      %p277 = scmp.ne.s32.totalorder %s269, %s272
      %p278 = scmp.eq.s32.totalorder %s18, 0
      %p279 = por %p277, %p278
      %p280 = scmp.ne.s32.totalorder %s269, %s272
      %p281 = scmp.eq.s32.totalorder %s23, 3
      %p282 = por %p280, %p281
      %p283 = scmp.ne.s32.totalorder %s272, %s273
      %p284 = scmp.eq.s32.totalorder %s23, 0
      %p285 = por %p283, %p284
      %p286 = scmp.ne.s32.totalorder %s272, %s273
      %p287 = scmp.eq.s32.totalorder %s24, 3
      %p288 = por %p286, %p287
      %p290 = scmp.ne.s32.totalorder %s273, %s289
      %p291 = scmp.eq.s32.totalorder %s24, 0
      %p292 = por %p290, %p291
      %p293 = scmp.le.s32.totalorder 1, %s18
      %p294 = scmp.lt.s32.totalorder %s18, 5
      %p295 = pnand %p293, %p294
      %p296 = pneg %p295
      // Predicated region
      $region9: #{tpu_custom_call.1} parent=5 // pred_check
        _
      $region10: #{tpu_custom_call.1} parent=5 // pred_check_branch
        %298 = sbr.rel (%p295) target = $region12
      $region11: #{tpu_custom_call.1} parent=5 // pred_region
        %s299 = ssub.s32 %s18, 1
        // Predicated region
        $region13: #{tpu_custom_call.1} parent=11 // pred_check
          %p300 = pneg %p103
        $region14: #{tpu_custom_call.1} parent=11 // pred_check_branch
          %302 = sbr.rel (%p300) target = $region16
        $region15: #{tpu_custom_call.1} parent=11 // pred_region
          _
        $region16: #{tpu_custom_call.1} parent=11 // pred_fallthru
          _
      $region12: #{tpu_custom_call.1} parent=5 // pred_fallthru
        _
      %p303 = scmp.lt.s32.totalorder %s18, 4
      // Predicated region
      $region17: #{tpu_custom_call.1} parent=5 // pred_check
        %p304 = pneg %p303
      $region18: #{tpu_custom_call.1} parent=5 // pred_check_branch
        %306 = sbr.rel (%p304) target = $region20
      $region19: #{tpu_custom_call.1} parent=5 // pred_region
        // Predicated region
        $region21: #{tpu_custom_call.1} parent=19 // pred_check
          %p307 = pneg %p50
        $region22: #{tpu_custom_call.1} parent=19 // pred_check_branch
          %309 = sbr.rel (%p307) target = $region24
        $region23: #{tpu_custom_call.1} parent=19 // pred_region
          %p310 = scmp.lt.s32.totalorder %s25, 1
          %s311 = scalar_select %p310, %s25, 1
          %s312 = scalar_lea.vmem %s0, %s311
        $region24: #{tpu_custom_call.1} parent=19 // pred_fallthru
          _
        // Predicated region
        $region25: #{tpu_custom_call.1} parent=19 // pred_check
          %p313 = pneg %p76
        $region26: #{tpu_custom_call.1} parent=19 // pred_check_branch
          %315 = sbr.rel (%p313) target = $region28
        $region27: #{tpu_custom_call.1} parent=19 // pred_region
          %p316 = scmp.lt.s32.totalorder %s25, 1
          %s317 = scalar_select %p316, %s25, 1
          %s318 = smul.addr %s317, 8
          %s319 = scalar_lea.vmem %s1, %s318
        $region28: #{tpu_custom_call.1} parent=19 // pred_fallthru
          _
        // Predicated region
        $region29: #{tpu_custom_call.1} parent=19 // pred_check
          %p320 = pneg %p123
        $region30: #{tpu_custom_call.1} parent=19 // pred_check_branch
          %322 = sbr.rel (%p320) target = $region32
        $region31: #{tpu_custom_call.1} parent=19 // pred_region
          %p323 = scmp.lt.s32.totalorder %s26, 1
          %s324 = scalar_select %p323, %s26, 1
          %s325 = smul.addr %s324, 2
          %s326 = smul.addr %s325, 8
          %s327 = scalar_lea.vmem %s3, %s326
        $region32: #{tpu_custom_call.1} parent=19 // pred_fallthru
          _
        // Predicated region
        $region33: #{tpu_custom_call.1} parent=19 // pred_check
          %p328 = pneg %p149
        $region34: #{tpu_custom_call.1} parent=19 // pred_check_branch
          %330 = sbr.rel (%p328) target = $region36
        $region35: #{tpu_custom_call.1} parent=19 // pred_region
          %p331 = scmp.lt.s32.totalorder %s26, 1
          %s332 = scalar_select %p331, %s26, 1
          %s333 = smul.addr %s332, 4
          %s334 = smul.addr %s333, 4
          %s335 = scalar_lea.vmem %s4, %s334
        $region36: #{tpu_custom_call.1} parent=19 // pred_fallthru
          _
        // Predicated region
        $region37: #{tpu_custom_call.1} parent=19 // pred_check
          %p336 = pneg %p175
        $region38: #{tpu_custom_call.1} parent=19 // pred_check_branch
          %338 = sbr.rel (%p336) target = $region40
        $region39: #{tpu_custom_call.1} parent=19 // pred_region
          %p339 = scmp.lt.s32.totalorder %s26, 1
          %s340 = scalar_select %p339, %s26, 1
          %s341 = smul.addr %s340, 4
          %s342 = smul.addr %s341, 4
          %s343 = scalar_lea.vmem %s5, %s342
        $region40: #{tpu_custom_call.1} parent=19 // pred_fallthru
          _
        // Predicated region
        $region41: #{tpu_custom_call.1} parent=19 // pred_check
          %p344 = pneg %p201
        $region42: #{tpu_custom_call.1} parent=19 // pred_check_branch
          %346 = sbr.rel (%p344) target = $region44
        $region43: #{tpu_custom_call.1} parent=19 // pred_region
          %p347 = scmp.lt.s32.totalorder %s26, 1
          %s348 = scalar_select %p347, %s26, 1
          %s349 = smul.addr %s348, 4
          %s350 = smul.addr %s349, 4
          %s351 = scalar_lea.vmem %s6, %s350
        $region44: #{tpu_custom_call.1} parent=19 // pred_fallthru
          _
        // Predicated region
        $region45: #{tpu_custom_call.1} parent=19 // pred_check
          %p352 = pneg %p227
        $region46: #{tpu_custom_call.1} parent=19 // pred_check_branch
          %354 = sbr.rel (%p352) target = $region48
        $region47: #{tpu_custom_call.1} parent=19 // pred_region
          %p355 = scmp.lt.s32.totalorder %s26, 1
          %s356 = scalar_select %p355, %s26, 1
          %s357 = scalar_lea.vmem %s7, %s356
        $region48: #{tpu_custom_call.1} parent=19 // pred_fallthru
          _
        // Predicated region
        $region49: #{tpu_custom_call.1} parent=19 // pred_check
          %p358 = pneg %p253
        $region50: #{tpu_custom_call.1} parent=19 // pred_check_branch
          %360 = sbr.rel (%p358) target = $region52
        $region51: #{tpu_custom_call.1} parent=19 // pred_region
          %p361 = scmp.lt.s32.totalorder %s26, 1
          %s362 = scalar_select %p361, %s26, 1
          %s363 = smul.addr %s362, 16
          %s364 = smul.addr %s363, 4
          %s365 = scalar_lea.vmem %s8, %s364
        $region52: #{tpu_custom_call.1} parent=19 // pred_fallthru
          _
      $region20: #{tpu_custom_call.1} parent=5 // pred_fallthru
        _
      %p366 = scmp.le.s32.totalorder 1, %s18
      %p367 = scmp.lt.s32.totalorder %s18, 5
      %p368 = pnand %p366, %p367
      %p369 = pneg %p368
      // Predicated region
      $region53: #{tpu_custom_call.1} parent=5 // pred_check
        _
      $region54: #{tpu_custom_call.1} parent=5 // pred_check_branch
        %371 = sbr.rel (%p368) target = $region56
      $region55: #{tpu_custom_call.1} parent=5 // pred_region
        %s372 = ssub.s32 %s18, 1
        %p373 = scmp.lt.s32.totalorder %s27, 1
        %s374 = scalar_select %p373, %s27, 1
        %s375 = scalar_lea.vmem %s0, %s374
        %p376 = pneg %p56
        %p377 = pneg %p53
        %p378 = scmp.lt.s32.totalorder %s27, 1
        %s379 = scalar_select %p378, %s27, 1
        %s380 = smul.addr %s379, 8
        %s381 = scalar_lea.vmem %s1, %s380
        %p382 = pneg %p82
        %p383 = pneg %p79
        %p384 = pneg %p103
        %p385 = pneg %p100
        %p386 = scmp.lt.s32.totalorder %s28, 1
        %s387 = scalar_select %p386, %s28, 1
        %s388 = smul.addr %s387, 2
        %s389 = smul.addr %s388, 8
        %s390 = scalar_lea.vmem %s3, %s389
        %p391 = pneg %p129
        %p392 = pneg %p126
        %p393 = scmp.lt.s32.totalorder %s28, 1
        %s394 = scalar_select %p393, %s28, 1
        %s395 = smul.addr %s394, 4
        %s396 = smul.addr %s395, 4
        %s397 = scalar_lea.vmem %s4, %s396
        %p398 = pneg %p155
        %p399 = pneg %p152
        %p400 = scmp.lt.s32.totalorder %s28, 1
        %s401 = scalar_select %p400, %s28, 1
        %s402 = smul.addr %s401, 4
        %s403 = smul.addr %s402, 4
        %s404 = scalar_lea.vmem %s5, %s403
        %p405 = pneg %p181
        %p406 = pneg %p178
        %p407 = scmp.lt.s32.totalorder %s28, 1
        %s408 = scalar_select %p407, %s28, 1
        %s409 = smul.addr %s408, 4
        %s410 = smul.addr %s409, 4
        %s411 = scalar_lea.vmem %s6, %s410
        %p412 = pneg %p207
        %p413 = pneg %p204
        %p414 = scmp.lt.s32.totalorder %s28, 1
        %s415 = scalar_select %p414, %s28, 1
        %s416 = scalar_lea.vmem %s7, %s415
        %p417 = pneg %p233
        %p418 = pneg %p230
        %p419 = scmp.lt.s32.totalorder %s28, 1
        %s420 = scalar_select %p419, %s28, 1
        %s421 = smul.addr %s420, 16
        %s422 = smul.addr %s421, 4
        %s423 = scalar_lea.vmem %s8, %s422
        %p424 = pneg %p259
        %p425 = pneg %p256
        %p426 = pneg %p285
        %p427 = pneg %p282
        %s428 = sand.u32 %s272, 1
        %s429 = scalar_lea.sflag [#allocation5], %s428
        %s430 = sand.u32 %s272, 1
        %s431 = smul.addr %s430, 8
        %s432 = scalar_lea.vmem [#allocation4], %s431
        %p433 = scmp.lt.s32.totalorder %s27, 1
        %s434 = scalar_select %p433, %s27, 1
        %s435 = scalar_lea.vmem %s0, %s434
        %p436 = scmp.lt.s32.totalorder %s27, 1
        %s437 = scalar_select %p436, %s27, 1
        %s438 = smul.addr %s437, 8
        %s439 = scalar_lea.vmem %s1, %s438
        %p440 = scmp.lt.s32.totalorder %s28, 1
        %s441 = scalar_select %p440, %s28, 1
        %s442 = smul.addr %s441, 2
        %s443 = smul.addr %s442, 8
        %s444 = scalar_lea.vmem %s3, %s443
        %p445 = scmp.lt.s32.totalorder %s28, 1
        %s446 = scalar_select %p445, %s28, 1
        %s447 = smul.addr %s446, 4
        %s448 = smul.addr %s447, 4
        %s449 = scalar_lea.vmem %s4, %s448
        %p450 = scmp.lt.s32.totalorder %s28, 1
        %s451 = scalar_select %p450, %s28, 1
        %s452 = smul.addr %s451, 4
        %s453 = smul.addr %s452, 4
        %s454 = scalar_lea.vmem %s5, %s453
        %p455 = scmp.lt.s32.totalorder %s28, 1
        %s456 = scalar_select %p455, %s28, 1
        %s457 = smul.addr %s456, 4
        %s458 = smul.addr %s457, 4
        %s459 = scalar_lea.vmem %s6, %s458
        %p460 = scmp.lt.s32.totalorder %s28, 1
        %s461 = scalar_select %p460, %s28, 1
        %s462 = scalar_lea.vmem %s7, %s461
        %p463 = scmp.lt.s32.totalorder %s28, 1
        %s464 = scalar_select %p463, %s28, 1
        %s465 = smul.addr %s464, 16
        %s466 = smul.addr %s465, 4
        %s467 = scalar_lea.vmem %s8, %s466
        %p469 = scmp.eq.s32.totalorder %s28, 0
        // Predicated region
        $region57: #{tpu_custom_call.1} parent=55 // pred_check
          %p470 = pneg %p469
        $region58: #{tpu_custom_call.1} parent=55 // pred_check_branch
          %472 = sbr.rel (%p470) target = $region60
        $region59: #{tpu_custom_call.1} parent=55 // pred_region
          %v473 = vld [vmem:[%s439] sm:$0xff]
          %v474 = vld [vmem:[%s2] sm:$0xff]
          %v475 = vadd.f32 %v473, %v474
          %vm476 = vcmask 261120
          %477 = vst.msk [vmem:[#allocation2] sm:$0xff] %vm476, %v475
        $region60: #{tpu_custom_call.1} parent=55 // pred_fallthru
          _
        %v478 = vlaneseq
        %v479 = vshrl.u32 %v478, 7
        %v480 = vlaneseq
        %v481 = vand.u32 %v480, 127
        %vm482 = vcmp.ge.s32.totalorder %v479, %v481
        %v483 = vld [vmem:[%s435] sm:$0x1]
        %vm484 = vcmp.ne.f32.partialorder %v483, 0.0
        %v485 = vsel %vm484, 1, 0
        %v486 = vperm.slane %v485, 0
        %vm487 = vcmp.eq.s32.totalorder %v486, 1
        %vm488 = vmand %vm482, %vm487
        %v489 = vsel %vm488, 0.0, -1e+09
        %v490 = vld [vmem:[#allocation2] sm:$0xff]
        %v491 = vld [vmem:[%s444] sm:$0xff]
        %v492 = vld [vmem:[%s444 + $0x8] sm:$0x1]
        %v493 = vld [vmem:[%s449] sm:$0xf]
        %v494 = vld [vmem:[%s449 + $0x4] sm:$0xf]
        %v495 = vld [vmem:[%s449 + $0x8] sm:$0xf]
        %v496 = vld [vmem:[%s449 + $0xc] sm:$0xf]
        %v497 = vld [vmem:[%s454] sm:$0xf]
        %v498 = vld [vmem:[%s454 + $0x4] sm:$0xf]
        %v499 = vld [vmem:[%s454 + $0x8] sm:$0xf]
        %v500 = vld [vmem:[%s454 + $0xc] sm:$0xf]
        %v501 = vld [vmem:[%s459] sm:$0xf]
        %v502 = vld [vmem:[%s459 + $0x4] sm:$0xf]
        %v503 = vld [vmem:[%s459 + $0x8] sm:$0xf]
        %v504 = vld [vmem:[%s459 + $0xc] sm:$0xf]
        %v505 = vld [vmem:[%s462] sm:$0x1]
        %v506 = vld [vmem:[%s467] sm:$0xf]
        %v507 = vld [vmem:[%s467 + $0x4] sm:$0xf]
        %v508 = vld [vmem:[%s467 + $0x8] sm:$0xf]
        %v509 = vld [vmem:[%s467 + $0xc] sm:$0xf]
        %v510 = vld [vmem:[%s467 + $0x10] sm:$0xf]
        %v511 = vld [vmem:[%s467 + $0x14] sm:$0xf]
        %v512 = vld [vmem:[%s467 + $0x18] sm:$0xf]
        %v513 = vld [vmem:[%s467 + $0x1c] sm:$0xf]
        %v514 = vld [vmem:[%s467 + $0x20] sm:$0xf]
        %v515 = vld [vmem:[%s467 + $0x24] sm:$0xf]
        %v516 = vld [vmem:[%s467 + $0x28] sm:$0xf]
        %v517 = vld [vmem:[%s467 + $0x2c] sm:$0xf]
        %v518 = vld [vmem:[%s467 + $0x30] sm:$0xf]
        %v519 = vld [vmem:[%s467 + $0x34] sm:$0xf]
        %v520 = vld [vmem:[%s467 + $0x38] sm:$0xf]
        %v521 = vld [vmem:[%s467 + $0x3c] sm:$0xf]
        %vm522 = vcmask 261120
        %v523 = vsel %vm522, %v490, 0.0
        %524 = vadd.xlane.f32.xlu0 %v523
        %v525 = vpop.xlane.xlu0 %524
        %v526 = vrcp.pop 32.0
        %v527 = vmul.f32 32.0, %v526
        %v528 = vsub.f32 1.0, %v527
        %v529 = vmul.f32 %v526, %v528
        %v530 = vadd.f32 %v526, %v529
        %vm531 = vweird.f32 %v526
        %v532 = vsel %vm531, %v526, %v530
        %v533 = vmul.f32 %v525, %v532
        %v534 = vsub.f32 %v490, %v533
        %v535 = vmul.f32 %v534, %v534
        %v536 = vsel %vm522, %v535, 0.0
        %537 = vadd.xlane.f32.xlu0 %v536
        %v538 = vpop.xlane.xlu0 %537
        %v539 = vmul.f32 %v538, 0.032258064
        %v540 = vrsqrt.pop %v539
        %v541 = vmul.f32 %v540, %v539
        %v542 = vmul.f32 %v541, %v540
        %v543 = vmul.f32 0.5, %v542
        %v544 = vsub.f32 1.5, %v543
        %v545 = vmul.f32 %v540, %v544
        %v546 = vmul.f32 %v539, %v545
        %vm547 = vcmp.eq.f32.partialorder %v539, inf
        %v548 = vsel %vm547, %v539, %v546
        %vm549 = vcmp.eq.f32.partialorder %v539, 0.0
        %v550 = vand.u32 %v539, 2147483648
        %v551 = vsel %vm549, %v550, %v548
        %v552 = vperm.slane %v491, 0
        %v553 = vmul.f32 %v552, %v534
        %v554 = vadd.f32 %v551, 1e-06
        %v555 = vrcp.pop %v554
        %v556 = vmul.f32 %v553, %v555
        %v557 = vperm.slane %v491, 1
        %v558 = vadd.f32 %v556, %v557
        %v559 = vpack.c.bf16 %v558, %v558
        %v564 = vunpack.c.l.b16 %v493
        %v565 = vunpack.c.l.b16 %v494
        %v566 = vunpack.c.l.b16 %v495
        %v567 = vunpack.c.l.b16 %v496
        %v568 = vpack.c.b16 %v565, %v564
        %v569 = vpack.c.b16 %v567, %v566
        %v573 = vsel %vm522, %v559, 0
        %575 = vmatpush.bf16.msra.mxu0 0
        %576 = vmatpush.bf16.msra.mxu0 0
        %577 = vmatpush.bf16.msra.mxu0 0
        %578 = vmatpush.bf16.msra.mxu0 0
        %579 = vmatpush.bf16.msra.mxu0 0
        %580 = vmatpush.bf16.msra.mxu0 0
        %581 = vmatpush.bf16.msra.mxu0 %v569
        %582 = vmatpush.bf16.msra.mxu0 %v568
        %583 = vmatmul.bf16.gmra.mxu0 %v573
        %v584 = vpop.f32.mrf.mxu0
        %v585 = vadd.f32 0.0, %v584
        %v586 = vpop.f32.mrf.mxu0
        %587 = vdwg.mxu0
        %v588 = vperm.slane %v491, 2
        %v589 = vadd.f32 %v585, %v588
        %v590 = vperm.slane %v491, 3
        %592 = vrot.lane.b32.xlu0 %v590, 32
        %v593 = vpop.permute.xlu0 %592
        %v595 = vadd.f32 %v585, %v593
        %v596 = vperm.slane %v491, 4
        %598 = vrot.lane.b32.xlu0 %v596, 64
        %v599 = vpop.permute.xlu0 %598
        %v601 = vadd.f32 %v585, %v599
        %v602 = vpack.c.bf16 %v589, %v589
        %v603 = vpack.c.bf16 %v595, %v595
        %605 = vrot.lane.b32.xlu0 %v603, 96
        %v606 = vpop.permute.xlu0 %605
        %vm607 = vcmask 130048
        %v609 = vsel %vm607, %v602, 0
        %v612 = vsel %vm607, %v606, 0
        %614 = vmatpush.bf16.xpose.msra.mxu0 0
        %615 = vmatpush.bf16.xpose.msra.mxu0 0
        %616 = vmatpush.bf16.xpose.msra.mxu0 0
        %617 = vmatpush.bf16.xpose.msra.mxu0 0
        %618 = vmatpush.bf16.xpose.msra.mxu0 0
        %619 = vmatpush.bf16.xpose.msra.mxu0 0
        %620 = vmatpush.bf16.xpose.msra.mxu0 0
        %621 = vmatpush.bf16.xpose.msra.mxu0 %v612
        %622 = vmatmul.bf16.gmra.mxu0 %v609
        %v623 = vpop.f32.mrf.mxu0
        %v624 = vadd.f32 0.0, %v623
        %v625 = vpop.f32.mrf.mxu0
        %626 = vdwg.mxu0
        %v627 = vmul.f32 %v624, 0.25
        %v628 = vadd.f32 %v627, %v489
        %vm629 = vcmask 64512
        %v630 = vsel %vm629, %v628, -inf
        %631 = vmax.xlane.f32.xlu0 %v630
        %v632 = vpop.xlane.xlu0 %631
        %v633 = vsub.f32 %v628, %v632
        %v634 = vmul.f32 %v633, 1.442695
        %v635 = vpow.pop %v634
        %v636 = vsel %vm629, %v635, 0.0
        %637 = vadd.xlane.f32.xlu0 %v636
        %v638 = vpop.xlane.xlu0 %637
        %v639 = vrcp.pop %v638
        %v640 = vmul.f32 %v635, %v639
        %v641 = vpack.c.bf16 %v640, %v640
        %v642 = vpack.c.bf16 %v601, %v601
        %644 = vrot.lane.b32.xlu0 %v642, 64
        %v645 = vpop.permute.xlu0 %644
        %v647 = vsel %vm629, %v641, 0
        %vm649 = vcmask 1043456
        %v651 = vsel %vm649, %v645, 0
        %653 = vmatpush.bf16.msra.mxu0 0
        %654 = vmatpush.bf16.msra.mxu0 0
        %655 = vmatpush.bf16.msra.mxu0 0
        %656 = vmatpush.bf16.msra.mxu0 0
        %657 = vmatpush.bf16.msra.mxu0 0
        %658 = vmatpush.bf16.msra.mxu0 0
        %659 = vmatpush.bf16.msra.mxu0 0
        %660 = vmatpush.bf16.msra.mxu0 %v651
        %661 = vmatmul.bf16.gmra.mxu0 %v647
        %v662 = vpop.f32.mrf.mxu0
        %v663 = vadd.f32 0.0, %v662
        %v664 = vpop.f32.mrf.mxu0
        %665 = vdwg.mxu0
        %v666 = vpack.c.bf16 %v663, %v663
        %vm667 = vcmask 125952
        %668 = vst.msk [vmem:[#allocation3] sm:$0xf] %vm667, %v666
        %670 = vrot.lane.b32.xlu0 %v602, 112
        %v671 = vpop.permute.xlu0 %670
        %672 = vrot.lane.b32.xlu0 %v603, 80
        %v673 = vpop.permute.xlu0 %672
        %v675 = vsel %vm607, %v671, 0
        %v678 = vsel %vm607, %v673, 0
        %680 = vmatpush.bf16.xpose.msra.mxu0 0
        %681 = vmatpush.bf16.xpose.msra.mxu0 0
        %682 = vmatpush.bf16.xpose.msra.mxu0 0
        %683 = vmatpush.bf16.xpose.msra.mxu0 0
        %684 = vmatpush.bf16.xpose.msra.mxu0 0
        %685 = vmatpush.bf16.xpose.msra.mxu0 0
        %686 = vmatpush.bf16.xpose.msra.mxu0 0
        %687 = vmatpush.bf16.xpose.msra.mxu0 %v678
        %688 = vmatmul.bf16.gmra.mxu0 %v675
        %v689 = vpop.f32.mrf.mxu0
        %v690 = vadd.f32 0.0, %v689
        %v691 = vpop.f32.mrf.mxu0
        %692 = vdwg.mxu0
        %v693 = vmul.f32 %v690, 0.25
        %v694 = vadd.f32 %v693, %v489
        %v695 = vsel %vm629, %v694, -inf
        %696 = vmax.xlane.f32.xlu0 %v695
        %v697 = vpop.xlane.xlu0 %696
        %v698 = vsub.f32 %v694, %v697
        %v699 = vmul.f32 %v698, 1.442695
        %v700 = vpow.pop %v699
        %v701 = vsel %vm629, %v700, 0.0
        %702 = vadd.xlane.f32.xlu0 %v701
        %v703 = vpop.xlane.xlu0 %702
        %v704 = vrcp.pop %v703
        %v705 = vmul.f32 %v700, %v704
        %v706 = vpack.c.bf16 %v705, %v705
        %707 = vrot.lane.b32.xlu0 %v642, 48
        %v708 = vpop.permute.xlu0 %707
        %v710 = vsel %vm629, %v706, 0
        %v713 = vsel %vm649, %v708, 0
        %715 = vmatpush.bf16.msra.mxu0 0
        %716 = vmatpush.bf16.msra.mxu0 0
        %717 = vmatpush.bf16.msra.mxu0 0
        %718 = vmatpush.bf16.msra.mxu0 0
        %719 = vmatpush.bf16.msra.mxu0 0
        %720 = vmatpush.bf16.msra.mxu0 0
        %721 = vmatpush.bf16.msra.mxu0 0
        %722 = vmatpush.bf16.msra.mxu0 %v713
        %723 = vmatmul.bf16.gmra.mxu0 %v710
        %v724 = vpop.f32.mrf.mxu0
        %v725 = vadd.f32 0.0, %v724
        %v726 = vpop.f32.mrf.mxu0
        %727 = vdwg.mxu0
        %v728 = vpack.c.bf16 %v725, %v725
        %730 = vrot.lane.b32.xlu0 %v728, 16
        %v731 = vpop.permute.xlu0 %730
        %vm733 = vcmask 257152
        %734 = vst.msk [vmem:[#allocation3] sm:$0xf] %vm733, %v731
        %v735 = vld [vmem:[#allocation3] sm:$0xf]
        %v740 = vunpack.c.l.b16 %v497
        %v741 = vunpack.c.l.b16 %v498
        %v742 = vunpack.c.l.b16 %v499
        %v743 = vunpack.c.l.b16 %v500
        %v744 = vpack.c.b16 %v741, %v740
        %v745 = vpack.c.b16 %v743, %v742
        %v749 = vsel %vm522, %v735, 0
        %751 = vmatpush.bf16.msra.mxu0 0
        %752 = vmatpush.bf16.msra.mxu0 0
        %753 = vmatpush.bf16.msra.mxu0 0
        %754 = vmatpush.bf16.msra.mxu0 0
        %755 = vmatpush.bf16.msra.mxu0 0
        %756 = vmatpush.bf16.msra.mxu0 0
        %757 = vmatpush.bf16.msra.mxu0 %v745
        %758 = vmatpush.bf16.msra.mxu0 %v744
        %759 = vmatmul.bf16.gmra.mxu0 %v749
        %v760 = vpop.f32.mrf.mxu0
        %v761 = vadd.f32 0.0, %v760
        %v762 = vpop.f32.mrf.mxu0
        %763 = vdwg.mxu0
        %v764 = vadd.f32 %v490, %v761
        %v765 = vperm.slane %v491, 5
        %v766 = vadd.f32 %v764, %v765
        %v767 = vsel %vm522, %v766, 0.0
        %768 = vadd.xlane.f32.xlu0 %v767
        %v769 = vpop.xlane.xlu0 %768
        %v770 = vmul.f32 %v769, %v532
        %v771 = vsub.f32 %v766, %v770
        %v772 = vmul.f32 %v771, %v771
        %v773 = vsel %vm522, %v772, 0.0
        %774 = vadd.xlane.f32.xlu0 %v773
        %v775 = vpop.xlane.xlu0 %774
        %v776 = vmul.f32 %v775, 0.032258064
        %v777 = vrsqrt.pop %v776
        %v778 = vmul.f32 %v777, %v776
        %v779 = vmul.f32 %v778, %v777
        %v780 = vmul.f32 0.5, %v779
        %v781 = vsub.f32 1.5, %v780
        %v782 = vmul.f32 %v777, %v781
        %v783 = vmul.f32 %v776, %v782
        %vm784 = vcmp.eq.f32.partialorder %v776, inf
        %v785 = vsel %vm784, %v776, %v783
        %vm786 = vcmp.eq.f32.partialorder %v776, 0.0
        %v787 = vand.u32 %v776, 2147483648
        %v788 = vsel %vm786, %v787, %v785
        %v789 = vperm.slane %v491, 6
        %v790 = vmul.f32 %v789, %v771
        %v791 = vadd.f32 %v788, 1e-06
        %v792 = vrcp.pop %v791
        %v793 = vmul.f32 %v790, %v792
        %v794 = vperm.slane %v491, 7
        %v795 = vadd.f32 %v793, %v794
        %v796 = vpack.c.bf16 %v795, %v795
        %v798 = vperm.slane %v505, 0
        %v804 = vunpack.c.l.b16 %v501
        %v805 = vunpack.c.l.b16 %v502
        %v806 = vunpack.c.l.b16 %v503
        %v807 = vunpack.c.l.b16 %v504
        %v808 = vpack.c.b16 %v805, %v804
        %v809 = vpack.c.b16 %v807, %v806
        %v813 = vsel %vm522, %v796, 0
        %815 = vmatpush.bf16.msra.mxu0 0
        %816 = vmatpush.bf16.msra.mxu0 0
        %817 = vmatpush.bf16.msra.mxu0 0
        %818 = vmatpush.bf16.msra.mxu0 0
        %819 = vmatpush.bf16.msra.mxu0 0
        %820 = vmatpush.bf16.msra.mxu0 0
        %821 = vmatpush.bf16.msra.mxu0 %v809
        %822 = vmatpush.bf16.msra.mxu0 %v808
        %823 = vmatmul.bf16.gmra.mxu0 %v813
        %v824 = vpop.f32.mrf.mxu0
        %v825 = vadd.f32 %v798, %v824
        %v826 = vpop.f32.mrf.mxu0
        %827 = vdwg.mxu0
        %v828 = vmul.f32 %v825, 0.5
        %v829 = vmul.f32 %v825, 0.044715
        %v830 = vmul.f32 %v829, %v825
        %v831 = vmul.f32 %v830, %v825
        %v832 = vadd.f32 %v825, %v831
        %v833 = vmul.f32 %v832, 0.7978846
        %v834 = vtanh.pop %v833
        %v835 = vadd.f32 %v834, 1.0
        %v836 = vmul.f32 %v828, %v835
        %v837 = vpack.c.bf16 %v836, %v836
        %v854 = vunpack.c.l.b16 %v506
        %v855 = vunpack.c.l.b16 %v507
        %v856 = vunpack.c.l.b16 %v508
        %v857 = vunpack.c.l.b16 %v509
        %v858 = vunpack.c.l.b16 %v510
        %v859 = vunpack.c.l.b16 %v511
        %v860 = vunpack.c.l.b16 %v512
        %v861 = vunpack.c.l.b16 %v513
        %v862 = vunpack.c.l.b16 %v514
        %v863 = vunpack.c.l.b16 %v515
        %v864 = vunpack.c.l.b16 %v516
        %v865 = vunpack.c.l.b16 %v517
        %v866 = vunpack.c.l.b16 %v518
        %v867 = vunpack.c.l.b16 %v519
        %v868 = vunpack.c.l.b16 %v520
        %v869 = vunpack.c.l.b16 %v521
        %v870 = vpack.c.b16 %v855, %v854
        %v871 = vpack.c.b16 %v857, %v856
        %v872 = vpack.c.b16 %v859, %v858
        %v873 = vpack.c.b16 %v861, %v860
        %v874 = vpack.c.b16 %v863, %v862
        %v875 = vpack.c.b16 %v865, %v864
        %v876 = vpack.c.b16 %v867, %v866
        %v877 = vpack.c.b16 %v869, %v868
        %886 = vmatpush.bf16.msra.mxu0 %v877
        %887 = vmatpush.bf16.msra.mxu0 %v876
        %888 = vmatpush.bf16.msra.mxu0 %v875
        %889 = vmatpush.bf16.msra.mxu0 %v874
        %890 = vmatpush.bf16.msra.mxu0 %v873
        %891 = vmatpush.bf16.msra.mxu0 %v872
        %892 = vmatpush.bf16.msra.mxu0 %v871
        %893 = vmatpush.bf16.msra.mxu0 %v870
        %894 = vmatmul.bf16.gmra.mxu0 %v837
        %v895 = vpop.f32.mrf.mxu0
        %v896 = vadd.f32 0.0, %v895
        %v897 = vpop.f32.mrf.mxu0
        %898 = vdwg.mxu0
        %v899 = vadd.f32 %v766, %v896
        %v900 = vperm.slane %v492, 0
        %v901 = vadd.f32 %v899, %v900
        %902 = vst.msk [vmem:[#allocation2] sm:$0xff] %vm522, %v901
        %p903 = scmp.eq.s32.totalorder %s28, 1
        // Predicated region
        $region61: #{tpu_custom_call.1} parent=55 // pred_check
          %p904 = pneg %p903
        $region62: #{tpu_custom_call.1} parent=55 // pred_check_branch
          %906 = sbr.rel (%p904) target = $region64
        $region63: #{tpu_custom_call.1} parent=55 // pred_region
          %907 = vst.msk [vmem:[%s432] sm:$0xff] %vm522, %v901
        $region64: #{tpu_custom_call.1} parent=55 // pred_fallthru
          _
        %s908 = sand.u32 %s272, 1
        %s909 = scalar_lea.sflag [#allocation5], %s908
        %s910 = sand.u32 %s272, 1
        %s911 = smul.addr %s910, 8
        %s912 = scalar_lea.vmem [#allocation4], %s911
        // Predicated region
        $region65: #{tpu_custom_call.1} parent=55 // pred_check
          %p913 = pneg %p282
        $region66: #{tpu_custom_call.1} parent=55 // pred_check_branch
          %915 = sbr.rel (%p913) target = $region68
        $region67: #{tpu_custom_call.1} parent=55 // pred_region
          %917 = vsyncadd %s909, 0
          %s918 = smul.addr %s27, 8
          %s919 = scalar_lea.hbm %s9, %s918
          %s921 = sshll.u32 %s912, 4
          %s922 = int_to_ptr.vmem [resolvable:$true] %s921
          %s923 = sshll.u32 %s919, 4
          %s924 = int_to_ptr.hbm [resolvable:$true] %s923
          %926 = dma.vmem_to_hbm [thread:$0]  %s922, 128, %s924, %s909
        $region68: #{tpu_custom_call.1} parent=55 // pred_fallthru
          _
      $region56: #{tpu_custom_call.1} parent=5 // pred_fallthru
        _
      %p927 = scmp.le.s32.totalorder 2, %s18
      // Predicated region
      $region69: #{tpu_custom_call.1} parent=5 // pred_check
        %p928 = pneg %p927
      $region70: #{tpu_custom_call.1} parent=5 // pred_check_branch
        %930 = sbr.rel (%p928) target = $region72
      $region71: #{tpu_custom_call.1} parent=5 // pred_region
        %s931 = ssub.s32 %s18, 2
        // Predicated region
        $region73: #{tpu_custom_call.1} parent=71 // pred_check
          %p932 = pneg %p288
        $region74: #{tpu_custom_call.1} parent=71 // pred_check_branch
          %934 = sbr.rel (%p932) target = $region76
        $region75: #{tpu_custom_call.1} parent=71 // pred_region
          %s935 = sand.u32 %s273, 1
          %s936 = scalar_lea.sflag [#allocation5], %s935
          %s937 = sand.u32 %s273, 1
          %s938 = smul.addr %s937, 8
          %s939 = scalar_lea.vmem [#allocation4], %s938
          %941 = dma.done %s936, 128
        $region76: #{tpu_custom_call.1} parent=71 // pred_fallthru
          _
      $region72: #{tpu_custom_call.1} parent=5 // pred_fallthru
        _
    $region6: #{tpu_custom_call.1} parent=1 // loop_footer
      %s22 = sadd.s32 1, %s18
    $region7: #{tpu_custom_call.1} parent=1 // loop_footer_branch
      %17 = sbr.rel target = $region3
    $region8: #{tpu_custom_call.1} parent=1 // loop_exit
      _
    %942 = vsyncpa [#allocation5], 1
    %s943 = scalar_lea.sflag [#allocation5], 1
    %944 = vsyncpa %s943, 1

</llo_original>
